<compile_context>
chip_gen: v7x
topology: tpu7x:2x2x1
jax: 0.10.0
libtpu: 0.0.40
codegen_flags: <defaults>
</compile_context>

<pallas_src>
import math

import jax
import jax.numpy as jnp
from jax import lax
from jax.experimental import pallas as pl
from jax.experimental.pallas import tpu as pltpu

_LANE = 128
_PAIRWISE_MAX_D = 32       # above this, bisection is cheaper on the binding VALU slot
_BISECT_ITERS = 24         # bracket shrinks to 2^-24 on [-1, 0); exact refine after


def _cdiv(a, b):
    return -(-a // b)


def _vmem_limit_bytes():
    """Scoped-VMEM limit: ~75% of physical (v5e/v6e: 96 MiB, v7x: 48 MiB)."""
    try:
        cap = pltpu.get_tpu_info().vmem_capacity_bytes
    except Exception:
        cap = 64 * 1024 * 1024
    return int(min(max((cap * 3) // 4, 32 * 1024 * 1024), 100 * 1024 * 1024))


def _num_tensorcores():
    """Best-effort TensorCore count (v7x: 2, v5e/v6e: 1)."""
    try:
        info = pltpu.get_tpu_info()
    except Exception:
        return 1
    for attr in ("num_cores", "core_count", "num_tensorcores", "tensorcore_count"):
        v = getattr(info, attr, None)
        try:
            if v is not None and int(v) > 0:
                return int(v)
        except (TypeError, ValueError):
            pass
    try:
        # v7x has 64 MiB VMEM per TC and 2 TCs/chip; v5e/v6e have 128 MiB, 1 TC.
        if int(info.vmem_capacity_bytes) <= 64 * 1024 * 1024:
            return 2
    except Exception:
        pass
    return 1


def _choose_lane_tile(D, R, budget, pairwise, n_cores):
    """Largest lane tile (multiple of 128, or full R) that fits the VMEM budget."""
    if pairwise:
        # one (D, D, TL) f32 compare tensor + one product + in/out double buffers
        per_lane = (2 * D * D + 16 * D) * 4
    else:
        # in/out double buffers (16*D bytes f32) + a few (D, TL) f32 temps
        per_lane = 12 * D * 4
    tl = max(_LANE, (budget // per_lane) // _LANE * _LANE)

    if R <= tl:
        # Whole width fits in one block.  On 2-TC chips split cleanly so the
        # "parallel" grid axis can shard across both TensorCores.
        if n_cores >= 2:
            half = (R // (2 * _LANE)) * _LANE
            if half >= _LANE and R % half == 0:
                return half
        return R

    # Multi-step grid: balance tile sizes to minimize padding ...
    steps = _cdiv(R, tl)
    tl = max(_LANE, _cdiv(_cdiv(R, steps), _LANE) * _LANE)
    # ... and on 2-TC chips prefer an even step count so no core idles last.
    if n_cores >= 2:
        steps = _cdiv(R, tl)
        if steps > 1 and steps % 2:
            tl2 = max(_LANE, _cdiv(_cdiv(R, steps + 1), _LANE) * _LANE)
            if _cdiv(R, tl2) % 2 == 0:
                tl = tl2
    return tl


def _sparsemax_pairwise_kernel(x_ref, o_ref):
    """Exact sparsemax over axis 0 (sublane) of a (D, TL) block; O(D^2) VPU work."""
    x = x_ref[...].astype(jnp.float32)                          # (D, TL)
    s = x - jnp.max(x, axis=0, keepdims=True)                   # s <= 0, max == 0
    # Single f32 (D, D, TL) comparison tensor, reused for rank and cumsum.
    ge = (s[:, None, :] >= s[None, :, :]).astype(jnp.float32)   # ge[i,j,l] = s_i >= s_j
    cnt = jnp.sum(ge, axis=0)                                   # rank of element j
    csum = jnp.sum(ge * s[:, None, :], axis=0)                  # cumsum at that rank
    # j in support  <=>  rank_j * s_j > cumsum_j - 1  (sparsemax support lemma;
    # condition is constant inside tie groups, so ties are handled exactly).
    in_support = cnt * s > csum - 1.0
    k = jnp.sum(in_support.astype(jnp.float32), axis=0, keepdims=True)      # >= 1
    ssum = jnp.sum(jnp.where(in_support, s, 0.0), axis=0, keepdims=True)
    tau = (ssum - 1.0) / k
    o_ref[...] = jnp.maximum(s - tau, 0.0).astype(o_ref.dtype)


def _sparsemax_bisect_kernel(x_ref, o_ref):
    """Sparsemax over axis 0 via unrolled bisection on tau + exact refinement."""
    x = x_ref[...].astype(jnp.float32)                          # (D, TL)
    s = x - jnp.max(x, axis=0, keepdims=True)                   # tau* in [-1, 0)
    tl = s.shape[1]
    lo = jnp.full((1, tl), -1.0, jnp.float32)
    hi = jnp.zeros((1, tl), jnp.float32)

    def body(_, carry):
        lo, hi = carry
        mid = 0.5 * (lo + hi)
        f = jnp.sum(jnp.maximum(s - mid, 0.0), axis=0, keepdims=True) - 1.0
        go_up = f > 0.0                                         # tau* > mid
        return jnp.where(go_up, mid, lo), jnp.where(go_up, hi, mid)

    lo, hi = lax.fori_loop(0, _BISECT_ITERS, body, (lo, hi), unroll=True)
    tau_c = 0.5 * (lo + hi)                                     # within ~2^-25 of tau*
    in_support = s > tau_c                                      # support (k >= 1)
    k = jnp.sum(in_support.astype(jnp.float32), axis=0, keepdims=True)
    ssum = jnp.sum(jnp.where(in_support, s, 0.0), axis=0, keepdims=True)
    tau = (ssum - 1.0) / k                                      # exact given support
    o_ref[...] = jnp.maximum(s - tau, 0.0).astype(o_ref.dtype)


def _sparsemax_cols(x2d):
    """Sparsemax over axis 0 of a (D, R) array, lane-tiled over R."""
    D, R = x2d.shape
    limit = _vmem_limit_bytes()
    budget = (limit * 17) // 20
    n_cores = _num_tensorcores()
    pairwise = (D <= _PAIRWISE_MAX_D
                and (2 * D * D + 16 * D) * 4 * _LANE <= budget)
    tl = _choose_lane_tile(D, R, budget, pairwise, n_cores)
    pad = (-R) % tl
    if pad:                               # only taken when R isn't tile-aligned
        x2d = jnp.pad(x2d, ((0, 0), (0, pad)))
    Rp = R + pad
    kernel = _sparsemax_pairwise_kernel if pairwise else _sparsemax_bisect_kernel
    flops = Rp * ((4 * D * D + 10 * D) if pairwise
                  else D * (3 * _BISECT_ITERS + 10))
    out = pl.pallas_call(
        kernel,
        out_shape=jax.ShapeDtypeStruct((D, Rp), x2d.dtype),
        grid=(Rp // tl,),
        in_specs=[pl.BlockSpec((D, tl), lambda i: (0, i))],
        out_specs=pl.BlockSpec((D, tl), lambda i: (0, i)),
        compiler_params=pltpu.CompilerParams(
            dimension_semantics=("parallel",),
            vmem_limit_bytes=limit),
        cost_estimate=pl.CostEstimate(
            flops=int(flops),
            transcendentals=0,
            bytes_accessed=int(2 * D * Rp * x2d.dtype.itemsize)),
    )(x2d)
    if pad:
        out = out[:, :R]
    return out


def soft_thresholding_operation(x, dim=2, topk=128):
    # The reference's data-dependent "retry with 2*topk" recursion always
    # converges to the exact sparsemax, which is what we compute; `topk` is
    # therefore not needed for the forward.
    del topk
    dim = dim % x.ndim
    xt = jnp.moveaxis(x, dim, 0)          # single transpose: reduction axis leads,
    lead = xt.shape                       # remaining axes become the lane axis
    D = lead[0]
    R = math.prod(lead[1:])
    out2d = _sparsemax_cols(xt.reshape(D, R))
    return jnp.moveaxis(out2d.reshape(lead), 0, dim)


def _sparsemax_reference(x, dim=2):
    """Pure-JAX mirror of the PyTorch forward (full-sort path)."""
    s = x - jnp.max(x, axis=dim, keepdims=True)
    z = -jnp.sort(-s, axis=dim)                  # descending sort
    d = x.shape[dim]
    shape = [1] * x.ndim
    shape[dim] = d
    ar = jnp.arange(1, d + 1, dtype=x.dtype).reshape(shape)
    csum = jnp.cumsum(z, axis=dim) - 1.0
    support = ar * z > csum
    k = jnp.sum(support, axis=dim, keepdims=True)
    tau = jnp.take_along_axis(csum, k.astype(jnp.int32) - 1, axis=dim)
    tau = tau / k.astype(x.dtype)
    return jnp.maximum(s - tau, 0.0)


# TODO(synk): only the forward pass of SoftThresholdingOperationFun is
# implemented; the custom backward (sparsemax VJP) is not translated here.

if __name__ == "__main__":
    key = jax.random.PRNGKey(0)
    k1, k2 = jax.random.split(key)

    op = jax.jit(lambda a: soft_thresholding_operation(a, dim=2, topk=128))

    # NCHW input; module defaults dim=2 (reduce over H), topk=128 (>= H).
    x = jax.random.normal(k1, (2, 4, 16, 16), dtype=jnp.float32)
    out = jax.block_until_ready(op(x))
    ref = _sparsemax_reference(x, dim=2)
    assert out.shape == x.shape and out.dtype == x.dtype
    assert jnp.allclose(out, ref, atol=1e-5, rtol=1e-5), "mismatch (pairwise path)"
    assert jnp.allclose(jnp.sum(out, axis=2), 1.0, atol=1e-4)

    # Longer reduction axis exercises the bounded-VMEM bisection path.
    x2 = jax.random.normal(k2, (1, 2, 160, 8), dtype=jnp.float32)
    out2 = jax.block_until_ready(op(x2))
    ref2 = _sparsemax_reference(x2, dim=2)
    assert out2.shape == x2.shape and out2.dtype == x2.dtype
    assert jnp.allclose(out2, ref2, atol=2e-5, rtol=2e-5), "mismatch (bisection path)"
    assert jnp.allclose(jnp.sum(out2, axis=2), 1.0, atol=1e-4)

    print("KERNEL_OK")
</pallas_src>

<mosaic_0001>
module attributes {stable_mosaic.version = 11 : i64} {
  func.func @_sparsemax_pairwise_kernel(%arg0: i32, %arg1: memref<16x128xf32, #tpu.memory_space<vmem>>, %arg2: memref<16x128xf32, #tpu.memory_space<vmem>>) attributes {dimension_semantics = [#tpu.dimension_semantics<parallel>], iteration_bounds = array<i64: 1>, scalar_prefetch = 0 : i64, scratch_operands = 0 : i64, tpu.core_type = #tpu.core_type<tc>, window_params = [{transform_indices = @transform_0, window_bounds = array<i64: 16, 128>}, {transform_indices = @transform_1, window_bounds = array<i64: 16, 128>}]} {
    %c0 = arith.constant 0 : index
    %c0_0 = arith.constant 0 : index
    %0 = vector.load %arg1[%c0, %c0_0] : memref<16x128xf32, #tpu.memory_space<vmem>>, vector<16x128xf32>
    %cst = arith.constant dense<0xFF800000> : vector<128xf32>
    %1 = vector.multi_reduction <maximumf>, %0, %cst [0] : vector<16x128xf32> to vector<128xf32>
    %2 = vector.shape_cast %1 : vector<128xf32> to vector<1x128xf32>
    %3 = vector.broadcast %2 : vector<1x128xf32> to vector<16x128xf32>
    %4 = arith.subf %0, %3 : vector<16x128xf32>
    %5 = vector.shape_cast %4 : vector<16x128xf32> to vector<16x1x128xf32>
    %6 = vector.shape_cast %4 : vector<16x128xf32> to vector<1x16x128xf32>
    %7 = vector.broadcast %5 : vector<16x1x128xf32> to vector<16x16x128xf32>
    %8 = vector.broadcast %6 : vector<1x16x128xf32> to vector<16x16x128xf32>
    %9 = arith.cmpf oge, %7, %8 : vector<16x16x128xf32>
    %10 = arith.extui %9 : vector<16x16x128xi1> to vector<16x16x128xi32>
    %11 = arith.sitofp %10 : vector<16x16x128xi32> to vector<16x16x128xf32>
    %cst_1 = arith.constant dense<0.000000e+00> : vector<16x128xf32>
    %12 = vector.multi_reduction <add>, %11, %cst_1 [0] : vector<16x16x128xf32> to vector<16x128xf32>
    %13 = vector.shape_cast %4 : vector<16x128xf32> to vector<16x1x128xf32>
    %14 = vector.broadcast %13 : vector<16x1x128xf32> to vector<16x16x128xf32>
    %15 = arith.mulf %11, %14 : vector<16x16x128xf32>
    %cst_2 = arith.constant dense<0.000000e+00> : vector<16x128xf32>
    %16 = vector.multi_reduction <add>, %15, %cst_2 [0] : vector<16x16x128xf32> to vector<16x128xf32>
    %17 = arith.mulf %12, %4 : vector<16x128xf32>
    %cst_3 = arith.constant 1.000000e+00 : f32
    %18 = vector.broadcast %cst_3 : f32 to vector<16x128xf32>
    %19 = arith.subf %16, %18 : vector<16x128xf32>
    %20 = arith.cmpf ogt, %17, %19 : vector<16x128xf32>
    %21 = arith.extui %20 : vector<16x128xi1> to vector<16x128xi32>
    %22 = arith.sitofp %21 : vector<16x128xi32> to vector<16x128xf32>
    %cst_4 = arith.constant dense<0.000000e+00> : vector<128xf32>
    %23 = vector.multi_reduction <add>, %22, %cst_4 [0] : vector<16x128xf32> to vector<128xf32>
    %24 = vector.shape_cast %23 : vector<128xf32> to vector<1x128xf32>
    %cst_5 = arith.constant 0.000000e+00 : f32
    %25 = vector.broadcast %cst_5 : f32 to vector<16x128xf32>
    %26 = arith.select %20, %4, %25 : vector<16x128xi1>, vector<16x128xf32>
    %cst_6 = arith.constant dense<0.000000e+00> : vector<128xf32>
    %27 = vector.multi_reduction <add>, %26, %cst_6 [0] : vector<16x128xf32> to vector<128xf32>
    %28 = vector.shape_cast %27 : vector<128xf32> to vector<1x128xf32>
    %cst_7 = arith.constant 1.000000e+00 : f32
    %29 = vector.broadcast %cst_7 : f32 to vector<1x128xf32>
    %30 = arith.subf %28, %29 : vector<1x128xf32>
    %31 = arith.divf %30, %24 : vector<1x128xf32>
    %32 = vector.broadcast %31 : vector<1x128xf32> to vector<16x128xf32>
    %33 = arith.subf %4, %32 : vector<16x128xf32>
    %cst_8 = arith.constant 0.000000e+00 : f32
    %34 = vector.broadcast %cst_8 : f32 to vector<16x128xf32>
    %35 = arith.maximumf %33, %34 : vector<16x128xf32>
    %c0_9 = arith.constant 0 : index
    %c0_10 = arith.constant 0 : index
    %36 = vector.load %arg2[%c0_9, %c0_10] : memref<16x128xf32, #tpu.memory_space<vmem>>, vector<16x128xf32>
    tpu.vector_store %arg2[%c0_9, %c0_10], %35 {strides = array<i32>} : memref<16x128xf32, #tpu.memory_space<vmem>>, vector<16x128xf32>,
    return
  }
  func.func @transform_0(%arg0: i32) -> (i32, i32) {
    %c0_i32 = arith.constant 0 : i32
    %c0_i32_0 = arith.constant 0 : i32
    return %c0_i32, %arg0 : i32, i32
  }
  func.func @transform_1(%arg0: i32) -> (i32, i32) {
    %c0_i32 = arith.constant 0 : i32
    %c0_i32_0 = arith.constant 0 : i32
    return %c0_i32, %arg0 : i32, i32
  }
}

</mosaic_0001>

<llo_original>
// kernel: _lambda_.1
$region0: #{_lambda_.1}
  #allocation0 [shape = 'u32[]', space=smem, size = 0x4, offset = 0x4, fixed_abs, tag = 'smem constant byte address 0x4 - core index']
  #allocation1 [shape = 'u32[144,128]{1,0:T(1,128)}', space=vmem, size = 0x12000, scoped, tag = 'internal scratch']
  %s0 = inlined_call_operand.vmem [shape: f32[16,128], index: 0, kind: input, shape index: {}]
  %s1 = inlined_call_operand.vmem [shape: f32[16,128], index: 1, kind: output, shape index: {}]
  %s2 = sld [smem:[#allocation0]]
  $region14: #{_lambda_.1} parent=0
    _
  %s4 = ssub.s32 1, %s2
  %s5 = scalar_select 0, %s4, %s2
  // Predicated region
  $region2: #{_lambda_.1} parent=0 // pred_check
    _
  $region3: #{_lambda_.1} parent=0 // pred_check_branch
    %7 = sbr.rel (0) target = $region5
  $region4: #{_lambda_.1} parent=0 // pred_region
    _
  $region5: #{_lambda_.1} parent=0 // pred_fallthru
    _
  %v8 = vld [vmem:[%s0] sm:$0xff]
  %v9 = vld [vmem:[%s0 + $0x8] sm:$0xff]
  %v10 = vmax.f32 %v8, %v9
  %v11 = vrot.slane %v10, 4
  %v12 = vmax.f32 %v10, %v11
  %v13 = vrot.slane %v12, 2
  %v14 = vmax.f32 %v12, %v13
  %v15 = vrot.slane %v14, 1
  %v16 = vmax.f32 %v14, %v15
  %v17 = vsub.f32 %v8, %v16
  %v18 = vsub.f32 %v9, %v16
  %v21 = vcombine.high %v17, %v17
  %v23 = vunpack.c.l.s4 1966171168
  %v24 = vunpack.c.0.s8 %v23
  %v25 = vlaneseq
  %v26 = vshrl.u32 %v25, 7
  %v27 = vsub.s32 %v24, %v26
  %v28 = vrot.slane %v17, %v27
  %v30 = vunpack.c.l.s4 1966171168
  %v31 = vunpack.c.0.s8 %v30
  %v32 = vlaneseq
  %v33 = vshrl.u32 %v32, 7
  %v34 = vsub.s32 %v31, %v33
  %v35 = vrot.slane %v21, %v34
  %v36 = vcombine.high %v28, %v28
  %v37 = vcombine.high %v35, %v35
  %v39 = vunpack.c.l.s4 1966171168
  %v40 = vunpack.c.0.s8 %v39
  %v41 = vlaneseq
  %v42 = vshrl.u32 %v41, 7
  %v43 = vsub.s32 %v40, %v42
  %v44 = vrot.slane %v28, %v43
  %v46 = vunpack.c.l.s4 1966171168
  %v47 = vunpack.c.0.s8 %v46
  %v48 = vlaneseq
  %v49 = vshrl.u32 %v48, 7
  %v50 = vsub.s32 %v47, %v49
  %v51 = vrot.slane %v35, %v50
  %v53 = vunpack.c.l.s4 1966171168
  %v54 = vunpack.c.0.s8 %v53
  %v55 = vlaneseq
  %v56 = vshrl.u32 %v55, 7
  %v57 = vsub.s32 %v54, %v56
  %v58 = vrot.slane %v36, %v57
  %v60 = vunpack.c.l.s4 1966171168
  %v61 = vunpack.c.0.s8 %v60
  %v62 = vlaneseq
  %v63 = vshrl.u32 %v62, 7
  %v64 = vsub.s32 %v61, %v63
  %v65 = vrot.slane %v37, %v64
  %v66 = vcombine.high %v44, %v44
  %v67 = vcombine.high %v51, %v51
  %v68 = vcombine.high %v58, %v58
  %v69 = vcombine.high %v65, %v65
  %v70 = vcombine.high %v18, %v18
  %v72 = vunpack.c.l.s4 1966171168
  %v73 = vunpack.c.0.s8 %v72
  %v74 = vlaneseq
  %v75 = vshrl.u32 %v74, 7
  %v76 = vsub.s32 %v73, %v75
  %v77 = vrot.slane %v18, %v76
  %v79 = vunpack.c.l.s4 1966171168
  %v80 = vunpack.c.0.s8 %v79
  %v81 = vlaneseq
  %v82 = vshrl.u32 %v81, 7
  %v83 = vsub.s32 %v80, %v82
  %v84 = vrot.slane %v70, %v83
  %v85 = vcombine.high %v77, %v77
  %v86 = vcombine.high %v84, %v84
  %v88 = vunpack.c.l.s4 1966171168
  %v89 = vunpack.c.0.s8 %v88
  %v90 = vlaneseq
  %v91 = vshrl.u32 %v90, 7
  %v92 = vsub.s32 %v89, %v91
  %v93 = vrot.slane %v77, %v92
  %v95 = vunpack.c.l.s4 1966171168
  %v96 = vunpack.c.0.s8 %v95
  %v97 = vlaneseq
  %v98 = vshrl.u32 %v97, 7
  %v99 = vsub.s32 %v96, %v98
  %v100 = vrot.slane %v84, %v99
  %v102 = vunpack.c.l.s4 1966171168
  %v103 = vunpack.c.0.s8 %v102
  %v104 = vlaneseq
  %v105 = vshrl.u32 %v104, 7
  %v106 = vsub.s32 %v103, %v105
  %v107 = vrot.slane %v85, %v106
  %v109 = vunpack.c.l.s4 1966171168
  %v110 = vunpack.c.0.s8 %v109
  %v111 = vlaneseq
  %v112 = vshrl.u32 %v111, 7
  %v113 = vsub.s32 %v110, %v112
  %v114 = vrot.slane %v86, %v113
  %v115 = vcombine.high %v93, %v93
  %v116 = vcombine.high %v100, %v100
  %v117 = vcombine.high %v107, %v107
  %v118 = vcombine.high %v114, %v114
  %v119 = vlaneseq
  %v120 = vshrl.u32 %v119, 7
  %v121 = vsub.s32 0, %v120
  %v122 = vrot.slane %v44, %v121
  %v123 = vlaneseq
  %v124 = vshrl.u32 %v123, 7
  %v125 = vsub.s32 0, %v124
  %v126 = vrot.slane %v58, %v125
  %v127 = vlaneseq
  %v128 = vshrl.u32 %v127, 7
  %v129 = vsub.s32 0, %v128
  %v130 = vrot.slane %v66, %v129
  %v131 = vlaneseq
  %v132 = vshrl.u32 %v131, 7
  %v133 = vsub.s32 0, %v132
  %v134 = vrot.slane %v68, %v133
  %v135 = vlaneseq
  %v136 = vshrl.u32 %v135, 7
  %v137 = vsub.s32 0, %v136
  %v138 = vrot.slane %v51, %v137
  %v139 = vlaneseq
  %v140 = vshrl.u32 %v139, 7
  %v141 = vsub.s32 0, %v140
  %v142 = vrot.slane %v65, %v141
  %v143 = vlaneseq
  %v144 = vshrl.u32 %v143, 7
  %v145 = vsub.s32 0, %v144
  %v146 = vrot.slane %v67, %v145
  %v147 = vlaneseq
  %v148 = vshrl.u32 %v147, 7
  %v149 = vsub.s32 0, %v148
  %v150 = vrot.slane %v69, %v149
  %v151 = vlaneseq
  %v152 = vshrl.u32 %v151, 7
  %v153 = vsub.s32 0, %v152
  %v154 = vrot.slane %v93, %v153
  %v155 = vlaneseq
  %v156 = vshrl.u32 %v155, 7
  %v157 = vsub.s32 0, %v156
  %v158 = vrot.slane %v107, %v157
  %v159 = vlaneseq
  %v160 = vshrl.u32 %v159, 7
  %v161 = vsub.s32 0, %v160
  %v162 = vrot.slane %v115, %v161
  %v163 = vlaneseq
  %v164 = vshrl.u32 %v163, 7
  %v165 = vsub.s32 0, %v164
  %v166 = vrot.slane %v117, %v165
  %v167 = vlaneseq
  %v168 = vshrl.u32 %v167, 7
  %v169 = vsub.s32 0, %v168
  %v170 = vrot.slane %v100, %v169
  %v171 = vlaneseq
  %v172 = vshrl.u32 %v171, 7
  %v173 = vsub.s32 0, %v172
  %v174 = vrot.slane %v114, %v173
  %v175 = vlaneseq
  %v176 = vshrl.u32 %v175, 7
  %v177 = vsub.s32 0, %v176
  %v178 = vrot.slane %v116, %v177
  %v179 = vlaneseq
  %v180 = vshrl.u32 %v179, 7
  %v181 = vsub.s32 0, %v180
  %v182 = vrot.slane %v118, %v181
  %vm199 = vcmp.ge.f32.partialorder %v122, %v17
  %vm200 = vcmp.ge.f32.partialorder %v122, %v18
  %vm201 = vcmp.ge.f32.partialorder %v126, %v17
  %vm202 = vcmp.ge.f32.partialorder %v126, %v18
  %vm203 = vcmp.ge.f32.partialorder %v130, %v17
  %vm204 = vcmp.ge.f32.partialorder %v130, %v18
  %vm205 = vcmp.ge.f32.partialorder %v134, %v17
  %vm206 = vcmp.ge.f32.partialorder %v134, %v18
  %vm207 = vcmp.ge.f32.partialorder %v138, %v17
  %vm208 = vcmp.ge.f32.partialorder %v138, %v18
  %vm209 = vcmp.ge.f32.partialorder %v142, %v17
  %vm210 = vcmp.ge.f32.partialorder %v142, %v18
  %vm211 = vcmp.ge.f32.partialorder %v146, %v17
  %vm212 = vcmp.ge.f32.partialorder %v146, %v18
  %vm213 = vcmp.ge.f32.partialorder %v150, %v17
  %vm214 = vcmp.ge.f32.partialorder %v150, %v18
  %vm215 = vcmp.ge.f32.partialorder %v154, %v17
  %vm216 = vcmp.ge.f32.partialorder %v154, %v18
  %vm217 = vcmp.ge.f32.partialorder %v158, %v17
  %vm218 = vcmp.ge.f32.partialorder %v158, %v18
  %vm219 = vcmp.ge.f32.partialorder %v162, %v17
  %vm220 = vcmp.ge.f32.partialorder %v162, %v18
  %vm221 = vcmp.ge.f32.partialorder %v166, %v17
  %vm222 = vcmp.ge.f32.partialorder %v166, %v18
  %vm223 = vcmp.ge.f32.partialorder %v170, %v17
  %vm224 = vcmp.ge.f32.partialorder %v170, %v18
  %vm225 = vcmp.ge.f32.partialorder %v174, %v17
  %vm226 = vcmp.ge.f32.partialorder %v174, %v18
  %vm227 = vcmp.ge.f32.partialorder %v178, %v17
  %vm228 = vcmp.ge.f32.partialorder %v178, %v18
  %vm229 = vcmp.ge.f32.partialorder %v182, %v17
  %vm230 = vcmp.ge.f32.partialorder %v182, %v18
  %v231 = vsel %vm199, 1, 0
  %v232 = vsel %vm200, 1, 0
  %v233 = vsel %vm201, 1, 0
  %v234 = vsel %vm202, 1, 0
  %v235 = vsel %vm203, 1, 0
  %v236 = vsel %vm204, 1, 0
  %v237 = vsel %vm205, 1, 0
  %v238 = vsel %vm206, 1, 0
  %v239 = vsel %vm207, 1, 0
  %v240 = vsel %vm208, 1, 0
  %v241 = vsel %vm209, 1, 0
  %v242 = vsel %vm210, 1, 0
  %v243 = vsel %vm211, 1, 0
  %v244 = vsel %vm212, 1, 0
  %v245 = vsel %vm213, 1, 0
  %v246 = vsel %vm214, 1, 0
  %v247 = vsel %vm215, 1, 0
  %v248 = vsel %vm216, 1, 0
  %v249 = vsel %vm217, 1, 0
  %v250 = vsel %vm218, 1, 0
  %v251 = vsel %vm219, 1, 0
  %v252 = vsel %vm220, 1, 0
  %v253 = vsel %vm221, 1, 0
  %v254 = vsel %vm222, 1, 0
  %v255 = vsel %vm223, 1, 0
  %v256 = vsel %vm224, 1, 0
  %v257 = vsel %vm225, 1, 0
  %v258 = vsel %vm226, 1, 0
  %v259 = vsel %vm227, 1, 0
  %v260 = vsel %vm228, 1, 0
  %v261 = vsel %vm229, 1, 0
  %v262 = vsel %vm230, 1, 0
  %v263 = vcvt.s32.f32 %v231
  %v264 = vcvt.s32.f32 %v232
  %v265 = vcvt.s32.f32 %v233
  %v266 = vcvt.s32.f32 %v234
  %v267 = vcvt.s32.f32 %v235
  %v268 = vcvt.s32.f32 %v236
  %v269 = vcvt.s32.f32 %v237
  %v270 = vcvt.s32.f32 %v238
  %v271 = vcvt.s32.f32 %v239
  %v272 = vcvt.s32.f32 %v240
  %v273 = vcvt.s32.f32 %v241
  %v274 = vcvt.s32.f32 %v242
  %v275 = vcvt.s32.f32 %v243
  %v276 = vcvt.s32.f32 %v244
  %v277 = vcvt.s32.f32 %v245
  %v278 = vcvt.s32.f32 %v246
  %v279 = vcvt.s32.f32 %v247
  %v280 = vcvt.s32.f32 %v248
  %v281 = vcvt.s32.f32 %v249
  %v282 = vcvt.s32.f32 %v250
  %v283 = vcvt.s32.f32 %v251
  %v284 = vcvt.s32.f32 %v252
  %v285 = vcvt.s32.f32 %v253
  %v286 = vcvt.s32.f32 %v254
  %v287 = vcvt.s32.f32 %v255
  %v288 = vcvt.s32.f32 %v256
  %v289 = vcvt.s32.f32 %v257
  %v290 = vcvt.s32.f32 %v258
  %v291 = vcvt.s32.f32 %v259
  %v292 = vcvt.s32.f32 %v260
  %v293 = vcvt.s32.f32 %v261
  %v294 = vcvt.s32.f32 %v262
  %v295 = vadd.f32 %v263, %v265
  %v296 = vadd.f32 %v295, %v267
  %v297 = vadd.f32 %v296, %v269
  %v298 = vadd.f32 %v297, %v271
  %v299 = vadd.f32 %v298, %v273
  %v300 = vadd.f32 %v299, %v275
  %v301 = vadd.f32 %v300, %v277
  %v302 = vadd.f32 %v301, %v279
  %v303 = vadd.f32 %v302, %v281
  %v304 = vadd.f32 %v303, %v283
  %v305 = vadd.f32 %v304, %v285
  %v306 = vadd.f32 %v305, %v287
  %v307 = vadd.f32 %v306, %v289
  %v308 = vadd.f32 %v307, %v291
  %v309 = vadd.f32 %v308, %v293
  %v310 = vadd.f32 %v264, %v266
  %v311 = vadd.f32 %v310, %v268
  %v312 = vadd.f32 %v311, %v270
  %v313 = vadd.f32 %v312, %v272
  %v314 = vadd.f32 %v313, %v274
  %v315 = vadd.f32 %v314, %v276
  %v316 = vadd.f32 %v315, %v278
  %v317 = vadd.f32 %v316, %v280
  %v318 = vadd.f32 %v317, %v282
  %v319 = vadd.f32 %v318, %v284
  %v320 = vadd.f32 %v319, %v286
  %v321 = vadd.f32 %v320, %v288
  %v322 = vadd.f32 %v321, %v290
  %v323 = vadd.f32 %v322, %v292
  %v324 = vadd.f32 %v323, %v294
  %v325 = vmul.f32 %v263, %v122
  %v326 = vmul.f32 %v264, %v122
  %v327 = vmul.f32 %v265, %v126
  %v328 = vmul.f32 %v266, %v126
  %v329 = vmul.f32 %v267, %v130
  %v330 = vmul.f32 %v268, %v130
  %v331 = vmul.f32 %v269, %v134
  %v332 = vmul.f32 %v270, %v134
  %v333 = vmul.f32 %v271, %v138
  %v334 = vmul.f32 %v272, %v138
  %v335 = vmul.f32 %v273, %v142
  %v336 = vmul.f32 %v274, %v142
  %v337 = vmul.f32 %v275, %v146
  %v338 = vmul.f32 %v276, %v146
  %v339 = vmul.f32 %v277, %v150
  %v340 = vmul.f32 %v278, %v150
  %v341 = vmul.f32 %v279, %v154
  %v342 = vmul.f32 %v280, %v154
  %v343 = vmul.f32 %v281, %v158
  %v344 = vmul.f32 %v282, %v158
  %v345 = vmul.f32 %v283, %v162
  %v346 = vmul.f32 %v284, %v162
  %v347 = vmul.f32 %v285, %v166
  %v348 = vmul.f32 %v286, %v166
  %v349 = vmul.f32 %v287, %v170
  %v350 = vmul.f32 %v288, %v170
  %v351 = vmul.f32 %v289, %v174
  %v352 = vmul.f32 %v290, %v174
  %v353 = vmul.f32 %v291, %v178
  %v354 = vmul.f32 %v292, %v178
  %v355 = vmul.f32 %v293, %v182
  %v356 = vmul.f32 %v294, %v182
  %v357 = vadd.f32 %v325, %v327
  %v358 = vadd.f32 %v357, %v329
  %v359 = vadd.f32 %v358, %v331
  %v360 = vadd.f32 %v359, %v333
  %v361 = vadd.f32 %v360, %v335
  %v362 = vadd.f32 %v361, %v337
  %v363 = vadd.f32 %v362, %v339
  %v364 = vadd.f32 %v363, %v341
  %v365 = vadd.f32 %v364, %v343
  %v366 = vadd.f32 %v365, %v345
  %v367 = vadd.f32 %v366, %v347
  %v368 = vadd.f32 %v367, %v349
  %v369 = vadd.f32 %v368, %v351
  %v370 = vadd.f32 %v369, %v353
  %v371 = vadd.f32 %v370, %v355
  %v372 = vadd.f32 %v326, %v328
  %v373 = vadd.f32 %v372, %v330
  %v374 = vadd.f32 %v373, %v332
  %v375 = vadd.f32 %v374, %v334
  %v376 = vadd.f32 %v375, %v336
  %v377 = vadd.f32 %v376, %v338
  %v378 = vadd.f32 %v377, %v340
  %v379 = vadd.f32 %v378, %v342
  %v380 = vadd.f32 %v379, %v344
  %v381 = vadd.f32 %v380, %v346
  %v382 = vadd.f32 %v381, %v348
  %v383 = vadd.f32 %v382, %v350
  %v384 = vadd.f32 %v383, %v352
  %v385 = vadd.f32 %v384, %v354
  %v386 = vadd.f32 %v385, %v356
  %v387 = vmul.f32 %v309, %v17
  %v388 = vmul.f32 %v324, %v18
  %v389 = vsub.f32 %v371, 1.0
  %v390 = vsub.f32 %v386, 1.0
  %vm391 = vcmp.gt.f32.partialorder %v387, %v389
  %vm392 = vcmp.gt.f32.partialorder %v388, %v390
  %v393 = vsel %vm391, 1, 0
  %v394 = vsel %vm392, 1, 0
  %v395 = vcvt.s32.f32 %v393
  %v396 = vcvt.s32.f32 %v394
  %v397 = vadd.f32 %v395, %v396
  %v398 = vrot.slane %v397, 4
  %v399 = vadd.f32 %v397, %v398
  %v400 = vrot.slane %v399, 2
  %v401 = vadd.f32 %v399, %v400
  %v402 = vrot.slane %v401, 1
  %v403 = vadd.f32 %v401, %v402
  %v404 = vsel %vm391, %v17, 0.0
  %v405 = vsel %vm392, %v18, 0.0
  %v406 = vadd.f32 %v404, %v405
  %v407 = vrot.slane %v406, 4
  %v408 = vadd.f32 %v406, %v407
  %v409 = vrot.slane %v408, 2
  %v410 = vadd.f32 %v408, %v409
  %v411 = vrot.slane %v410, 1
  %v412 = vadd.f32 %v410, %v411
  %v413 = vsub.f32 %v412, 1.0
  %v414 = vrcp.pop %v403
  %v415 = vmul.f32 %v413, %v414
  %v416 = vsub.f32 %v17, %v415
  %v417 = vsub.f32 %v18, %v415
  %v418 = vmax.f32 %v416, 0.0
  %v419 = vmax.f32 %v417, 0.0
  %420 = vst [vmem:[%s1] sm:$0xff] %v418
  %421 = vst [vmem:[%s1 + $0x8] sm:$0xff] %v419
  // Predicated region
  $region6: #{_lambda_.1} parent=0 // pred_check
    _
  $region7: #{_lambda_.1} parent=0 // pred_check_branch
    %423 = sbr.rel (0) target = $region9
  $region8: #{_lambda_.1} parent=0 // pred_region
    _
  $region9: #{_lambda_.1} parent=0 // pred_fallthru
    _
  // Predicated region
  $region10: #{_lambda_.1} parent=0 // pred_check
    _
  $region11: #{_lambda_.1} parent=0 // pred_check_branch
    %425 = sbr.rel (0) target = $region13
  $region12: #{_lambda_.1} parent=0 // pred_region
    _
  $region13: #{_lambda_.1} parent=0 // pred_fallthru
    _

</llo_original>
